<compile_context>
chip_gen: v5e
topology: v5e:2x2
jax: 0.10.0
libtpu: 0.0.40
codegen_flags: <defaults>
</compile_context>

<pallas_src>
import functools

import jax
import jax.numpy as jnp
from jax.experimental import pallas as pl
from jax.experimental.pallas import tpu as pltpu

EMBEDDING_DIM = 384
HIDDEN_DIM = 128


def siamese_kernel(x1_ref, x2_ref, w1_ref, b1_ref, w2_ref, b2_ref, o_ref):
    # x1_ref/x2_ref: (T, E) f32 activation tiles; w1_ref: (E, H) bf16 resident.
    w1 = w1_ref[...]
    b1 = b1_ref[...]                                     # (1, H) f32
    # fc1 for both branches: in-kernel bf16 cast (full-rate MXU), f32 accumulate.
    h1 = jnp.dot(x1_ref[...].astype(jnp.bfloat16), w1,
                 preferred_element_type=jnp.float32)
    h2 = jnp.dot(x2_ref[...].astype(jnp.bfloat16), w1,
                 preferred_element_type=jnp.float32)
    h1 = jnp.maximum(h1 + b1, 0.0)
    h2 = jnp.maximum(h2 + b1, 0.0)
    # fc2 (output dim 1): VPU multiply, then tile-aligned transpose + sublane
    # reduce so the logits come out lane-major as (1, T) for an unmasked store.
    wdiff = jnp.abs(h1 - h2) * w2_ref[...]               # (T, H) f32
    logits = jnp.sum(wdiff.T, axis=0, keepdims=True) + b2_ref[0]   # (1, T)
    o_ref[...] = jax.nn.sigmoid(logits).astype(o_ref.dtype)


@functools.partial(jax.jit, static_argnames=("b_tile",))
def siamese_forward(x1, x2, w1, b1, w2, b2, *, b_tile=512):
    B, E = x1.shape
    H = w1.shape[1]
    assert b_tile % 128 == 0, "b_tile must be a multiple of 128 (lane-dense out)"
    # Keep >=2 grid steps when the batch allows it so the "parallel" batch axis
    # can shard across v7x's two TensorCores (and the pipeline has overlap).
    while b_tile > 128 and pl.cdiv(B, b_tile) < 2:
        b_tile //= 2
    n_tiles = pl.cdiv(B, b_tile)
    B_pad = n_tiles * b_tile
    if B_pad != B:
        pad = ((0, B_pad - B), (0, 0))
        x1 = jnp.pad(x1, pad)
        x2 = jnp.pad(x2, pad)

    # Params only: tiny one-time casts/reshapes (weights are resident in VMEM).
    w1_bf = w1.astype(jnp.bfloat16)                       # (E, H) bf16
    b1_row = b1.reshape(1, H).astype(jnp.float32)         # (1, H) f32
    w2_row = w2.reshape(1, H).astype(jnp.float32)         # (1, H) f32
    b2_s = b2.reshape(1).astype(jnp.float32)              # (1,) scalar -> SMEM

    cost = pl.CostEstimate(
        # fc1 both branches + bias/relu/absdiff + fc2 mul-reduce
        flops=2 * 2 * B_pad * E * H + 6 * B_pad * H,
        transcendentals=B_pad,
        # x1+x2 f32 reads dominate; w1 bf16, b1/w2 f32, b2 scalar, (1,B_pad) out
        bytes_accessed=2 * B_pad * E * 4 + E * H * 2 + 2 * H * 4 + 4 + B_pad * 4,
    )

    out_row = pl.pallas_call(
        siamese_kernel,
        out_shape=jax.ShapeDtypeStruct((1, B_pad), jnp.float32),
        grid=(n_tiles,),
        in_specs=[
            # activations: separate (b_tile, E) f32 blocks, double-buffered DMA
            pl.BlockSpec((b_tile, E), lambda i: (i, 0)),
            pl.BlockSpec((b_tile, E), lambda i: (i, 0)),
            # weights / biases: same block every step -> resident in VMEM
            pl.BlockSpec((E, H), lambda i: (0, 0)),
            pl.BlockSpec((1, H), lambda i: (0, 0)),
            pl.BlockSpec((1, H), lambda i: (0, 0)),
            # fc2 bias as an SMEM scalar
            pl.BlockSpec(memory_space=pltpu.MemorySpace.SMEM),
        ],
        # lane-dense output: (1, b_tile) blocks of a (1, B_pad) row
        out_specs=pl.BlockSpec((1, b_tile), lambda i: (0, i)),
        compiler_params=pltpu.CompilerParams(
            dimension_semantics=("parallel",),
        ),
        cost_estimate=cost,
    )(x1, x2, w1_bf, b1_row, w2_row, b2_s)
    return out_row[0, :B].reshape(B, 1)


def init_params(key, embedding_dim, hidden_dim):
    k1, k2, k3, k4 = jax.random.split(key, 4)
    # Deterministic synthetic params; stored pre-transposed for x @ W.
    w1 = jax.random.normal(k1, (embedding_dim, hidden_dim), jnp.float32) * 0.05
    b1 = jax.random.normal(k2, (1, hidden_dim), jnp.float32) * 0.05
    w2 = jax.random.normal(k3, (hidden_dim, 1), jnp.float32) * 0.05
    b2 = jax.random.normal(k4, (1, 1), jnp.float32) * 0.05
    return w1, b1, w2, b2


if __name__ == "__main__":
    key = jax.random.PRNGKey(0)
    kx1, kx2, kp = jax.random.split(key, 3)

    # B=200 exercises padding (B_pad=256) and a 2-step batch grid at b_tile=128.
    B = 200
    x1 = jax.random.normal(kx1, (B, EMBEDDING_DIM), jnp.float32)
    x2 = jax.random.normal(kx2, (B, EMBEDDING_DIM), jnp.float32)
    w1, b1, w2, b2 = init_params(kp, EMBEDDING_DIM, HIDDEN_DIM)

    out = siamese_forward(x1, x2, w1, b1, w2, b2, b_tile=128)
    jax.block_until_ready(out)

    # Pure-JAX f32 reference. Kernel uses bf16 fc1 operands (f32 accumulation),
    # so tolerance is relaxed vs. an all-f32 comparison.
    h1 = jnp.maximum(x1 @ w1 + b1, 0.0)
    h2 = jnp.maximum(x2 @ w1 + b1, 0.0)
    ref = jax.nn.sigmoid(jnp.abs(h1 - h2) @ w2 + b2)
    assert out.shape == (B, 1)
    assert jnp.allclose(out, ref, atol=2e-2), "mismatch vs reference"

    print("KERNEL_OK")
</pallas_src>

<mosaic_0001>
module attributes {stable_mosaic.version = 11 : i64} {
  func.func @siamese_kernel(%arg0: i32, %arg1: memref<128x384xf32, #tpu.memory_space<vmem>>, %arg2: memref<128x384xf32, #tpu.memory_space<vmem>>, %arg3: memref<384x128xbf16, #tpu.memory_space<vmem>>, %arg4: memref<1x128xf32, #tpu.memory_space<vmem>>, %arg5: memref<1x128xf32, #tpu.memory_space<vmem>>, %arg6: memref<1xf32, #tpu.memory_space<smem>>, %arg7: memref<1x128xf32, #tpu.memory_space<vmem>>) attributes {dimension_semantics = [#tpu.dimension_semantics<parallel>], iteration_bounds = array<i64: 2>, scalar_prefetch = 0 : i64, scratch_operands = 0 : i64, tpu.core_type = #tpu.core_type<tc>, window_params = [{transform_indices = @transform_0, window_bounds = array<i64: 128, 384>}, {transform_indices = @transform_1, window_bounds = array<i64: 128, 384>}, {pipeline_mode = #tpu.pipeline_mode<synchronous>, transform_indices = @transform_2, window_bounds = array<i64: 384, 128>}, {pipeline_mode = #tpu.pipeline_mode<synchronous>, transform_indices = @transform_3, window_bounds = array<i64: 1, 128>}, {pipeline_mode = #tpu.pipeline_mode<synchronous>, transform_indices = @transform_4, window_bounds = array<i64: 1, 128>}, {transform_indices = @transform_5, window_bounds = array<i64: 1>}, {transform_indices = @transform_6, window_bounds = array<i64: 1, 128>}]} {
    %c0 = arith.constant 0 : index
    %c0_0 = arith.constant 0 : index
    %0 = vector.load %arg3[%c0, %c0_0] : memref<384x128xbf16, #tpu.memory_space<vmem>>, vector<384x128xbf16>
    %c0_1 = arith.constant 0 : index
    %c0_2 = arith.constant 0 : index
    %1 = vector.load %arg4[%c0_1, %c0_2] : memref<1x128xf32, #tpu.memory_space<vmem>>, vector<1x128xf32>
    %c0_3 = arith.constant 0 : index
    %c0_4 = arith.constant 0 : index
    %2 = vector.load %arg1[%c0_3, %c0_4] : memref<128x384xf32, #tpu.memory_space<vmem>>, vector<128x384xf32>
    %3 = arith.truncf %2 : vector<128x384xf32> to vector<128x384xbf16>
    %cst = arith.constant dense<0.000000e+00> : vector<128x128xf32>
    %4 = tpu.matmul %3, %0, %cst {dimension_numbers = #tpu.dot_dimension_numbers<[1], [0], [0], [1], [0, 0, 1, 1], [], []>} : vector<128x384xbf16>, vector<384x128xbf16>, vector<128x128xf32> -> vector<128x128xf32>
    %c0_5 = arith.constant 0 : index
    %c0_6 = arith.constant 0 : index
    %5 = vector.load %arg2[%c0_5, %c0_6] : memref<128x384xf32, #tpu.memory_space<vmem>>, vector<128x384xf32>
    %6 = arith.truncf %5 : vector<128x384xf32> to vector<128x384xbf16>
    %cst_7 = arith.constant dense<0.000000e+00> : vector<128x128xf32>
    %7 = tpu.matmul %6, %0, %cst_7 {dimension_numbers = #tpu.dot_dimension_numbers<[1], [0], [0], [1], [0, 0, 1, 1], [], []>} : vector<128x384xbf16>, vector<384x128xbf16>, vector<128x128xf32> -> vector<128x128xf32>
    %8 = vector.broadcast %1 : vector<1x128xf32> to vector<128x128xf32>
    %9 = arith.addf %4, %8 : vector<128x128xf32>
    %cst_8 = arith.constant 0.000000e+00 : f32
    %10 = vector.broadcast %cst_8 : f32 to vector<128x128xf32>
    %11 = arith.maximumf %9, %10 : vector<128x128xf32>
    %12 = vector.broadcast %1 : vector<1x128xf32> to vector<128x128xf32>
    %13 = arith.addf %7, %12 : vector<128x128xf32>
    %cst_9 = arith.constant 0.000000e+00 : f32
    %14 = vector.broadcast %cst_9 : f32 to vector<128x128xf32>
    %15 = arith.maximumf %13, %14 : vector<128x128xf32>
    %16 = arith.subf %11, %15 : vector<128x128xf32>
    %17 = math.absf %16 : vector<128x128xf32>
    %c0_10 = arith.constant 0 : index
    %c0_11 = arith.constant 0 : index
    %18 = vector.load %arg5[%c0_10, %c0_11] : memref<1x128xf32, #tpu.memory_space<vmem>>, vector<1x128xf32>
    %19 = vector.broadcast %18 : vector<1x128xf32> to vector<128x128xf32>
    %20 = arith.mulf %17, %19 : vector<128x128xf32>
    %21 = tpu.transpose %20, [1, 0] : vector<128x128xf32> -> vector<128x128xf32>
    %cst_12 = arith.constant dense<0.000000e+00> : vector<128xf32>
    %22 = vector.multi_reduction <add>, %21, %cst_12 [0] : vector<128x128xf32> to vector<128xf32>
    %23 = vector.shape_cast %22 : vector<128xf32> to vector<1x128xf32>
    %c0_13 = arith.constant 0 : index
    %24 = memref.load %arg6[%c0_13] : memref<1xf32, #tpu.memory_space<smem>>
    %25 = vector.broadcast %24 : f32 to vector<1x128xf32>
    %26 = arith.addf %23, %25 : vector<1x128xf32>
    %27 = arith.negf %26 : vector<1x128xf32>
    %28 = math.exp %27 : vector<1x128xf32>
    %cst_14 = arith.constant 1.000000e+00 : f32
    %29 = vector.broadcast %cst_14 : f32 to vector<1x128xf32>
    %30 = arith.addf %29, %28 : vector<1x128xf32>
    %31 = arith.divf %29, %30 : vector<1x128xf32>
    %c0_15 = arith.constant 0 : index
    %c0_16 = arith.constant 0 : index
    %32 = vector.load %arg7[%c0_15, %c0_16] : memref<1x128xf32, #tpu.memory_space<vmem>>, vector<1x128xf32>
    tpu.vector_store %arg7[%c0_15, %c0_16], %31 {strides = array<i32>} : memref<1x128xf32, #tpu.memory_space<vmem>>, vector<1x128xf32>,
    return
  }
  func.func @transform_0(%arg0: i32) -> (i32, i32) {
    %c0_i32 = arith.constant 0 : i32
    %c0_i32_0 = arith.constant 0 : i32
    return %arg0, %c0_i32 : i32, i32
  }
  func.func @transform_1(%arg0: i32) -> (i32, i32) {
    %c0_i32 = arith.constant 0 : i32
    %c0_i32_0 = arith.constant 0 : i32
    return %arg0, %c0_i32 : i32, i32
  }
  func.func @transform_2(%arg0: i32) -> (i32, i32) {
    %c0_i32 = arith.constant 0 : i32
    %c0_i32_0 = arith.constant 0 : i32
    %c0_i32_1 = arith.constant 0 : i32
    return %c0_i32, %c0_i32_0 : i32, i32
  }
  func.func @transform_3(%arg0: i32) -> (i32, i32) {
    %c0_i32 = arith.constant 0 : i32
    %c0_i32_0 = arith.constant 0 : i32
    %c0_i32_1 = arith.constant 0 : i32
    return %c0_i32, %c0_i32_0 : i32, i32
  }
  func.func @transform_4(%arg0: i32) -> (i32, i32) {
    %c0_i32 = arith.constant 0 : i32
    %c0_i32_0 = arith.constant 0 : i32
    %c0_i32_1 = arith.constant 0 : i32
    return %c0_i32, %c0_i32_0 : i32, i32
  }
  func.func @transform_5(%arg0: i32) -> i32 {
    %c0_i32 = arith.constant 0 : i32
    %c0_i32_0 = arith.constant 0 : i32
    return %c0_i32 : i32
  }
  func.func @transform_6(%arg0: i32) -> (i32, i32) {
    %c0_i32 = arith.constant 0 : i32
    %c0_i32_0 = arith.constant 0 : i32
    return %c0_i32, %arg0 : i32, i32
  }
}

</mosaic_0001>

<llo_original>
// kernel: siamese_forward.1
$region0: #{siamese_forward.1}
  #allocation0 [shape = 'u32[]', space=smem, size = 0x4, offset = 0x4, fixed_abs, tag = 'smem constant byte address 0x4 - core index']
  #allocation1 [shape = 'u32[72,128]{1,0:T(1,128)}', space=vmem, size = 0x9000, scoped, tag = 'internal scratch']
  #allocation2 [shape = 'f32[1]{0:T(128)S(6)}', space=smem, size = 0x200, scoped, tag = 'scoped memory for siamese_forward.1']
  %s0 = inlined_call_operand.vmem [shape: f32[256,384], index: 0, kind: input, shape index: {}]
  %s1 = inlined_call_operand.vmem [shape: f32[256,384], index: 1, kind: input, shape index: {}]
  %s2 = inlined_call_operand.vmem [shape: bf16[384,128], index: 2, kind: input, shape index: {}]
  %s3 = inlined_call_operand.vmem [shape: f32[1,128], index: 3, kind: input, shape index: {}]
  %s4 = inlined_call_operand.vmem [shape: f32[1,128], index: 4, kind: input, shape index: {}]
  %s5 = inlined_call_operand.<no memory space> [shape: f32[1], index: 5, kind: input, shape index: {}]
  %s6 = inlined_call_operand.vmem [shape: f32[1,256], index: 6, kind: output, shape index: {}]
  %s7 = sld [smem:[#allocation0]]
  $region57: #{siamese_forward.1} parent=0
    _
  %s9 = ssub.s32 1, %s7
  %s10 = scalar_select 0, %s9, %s7
  %11 = sst [smem:[#allocation2]] %s5
  loop: start=0, step=1, limit=4
  $region2: #{siamese_forward.1} parent=0 // loop_pre_header
    _
  $region3: #{siamese_forward.1} parent=0 // loop_header
    %s13 = sphi 0, %s17
    %p14 = scmp.ge.s32.totalorder %s13, 4
    %s23 = sphi 0, %s25
    %s26 = sphi 0, %s23
    %s27 = sphi 0, %s26
    %s43 = sphi 0, %s27
    %s49 = sphi 0, %s51
    %s52 = sphi 0, %s49
    %s53 = sphi 0, %s52
    %s69 = sphi 0, %s53
    %s73 = sphi 0, %s73
    %s75 = sphi 0, %s73
    %s76 = sphi 0, %s75
    %s90 = sphi 0, %s76
    %s94 = sphi 0, %s94
    %s96 = sphi 0, %s94
    %s97 = sphi 0, %s96
    %s111 = sphi 0, %s97
    %s115 = sphi 0, %s115
    %s117 = sphi 0, %s115
    %s118 = sphi 0, %s117
    %s132 = sphi 0, %s118
    %s136 = sphi 0, %s136
    %s138 = sphi 0, %s136
    %s139 = sphi 0, %s138
    %s153 = sphi 0, %s139
    %s159 = sphi 0, %s161
    %s162 = sphi 0, %s159
    %s163 = sphi 0, %s162
    %s179 = sphi 0, %s163
  $region4: #{siamese_forward.1} parent=0 // loop_header_branch
    %16 = sbr.rel (%p14) target = $region8
  $region5: #{siamese_forward.1} parent=0 // loop_body
    %s18 = ssub.s32 %s13, 1
    %s19 = ssub.s32 %s13, 2
    %s20 = sadd.s32 %s13, 1
    %s21 = ssub.s32 %s13, %s20
    %p22 = scmp.eq.s32.totalorder %s21, 0
    %s24 = sadd.s32 %s23, 1
    %s25 = scalar_select %p22, %s23, %s24
    %p28 = pneg %p22
    %p29 = scmp.eq.s32.totalorder %s13, 1
    %p30 = por %p28, %p29
    %p31 = scmp.ne.s32.totalorder %s23, %s26
    %p32 = scmp.eq.s32.totalorder %s13, 0
    %p33 = por %p31, %p32
    %p34 = scmp.ne.s32.totalorder %s23, %s26
    %p35 = scmp.eq.s32.totalorder %s18, 1
    %p36 = por %p34, %p35
    %p37 = scmp.ne.s32.totalorder %s26, %s27
    %p38 = scmp.eq.s32.totalorder %s18, 0
    %p39 = por %p37, %p38
    %p40 = scmp.ne.s32.totalorder %s26, %s27
    %p41 = scmp.eq.s32.totalorder %s19, 1
    %p42 = por %p40, %p41
    %p44 = scmp.ne.s32.totalorder %s27, %s43
    %p45 = scmp.eq.s32.totalorder %s19, 0
    %p46 = por %p44, %p45
    %s47 = ssub.s32 %s13, %s20
    %p48 = scmp.eq.s32.totalorder %s47, 0
    %s50 = sadd.s32 %s49, 1
    %s51 = scalar_select %p48, %s49, %s50
    %p54 = pneg %p48
    %p55 = scmp.eq.s32.totalorder %s13, 1
    %p56 = por %p54, %p55
    %p57 = scmp.ne.s32.totalorder %s49, %s52
    %p58 = scmp.eq.s32.totalorder %s13, 0
    %p59 = por %p57, %p58
    %p60 = scmp.ne.s32.totalorder %s49, %s52
    %p61 = scmp.eq.s32.totalorder %s18, 1
    %p62 = por %p60, %p61
    %p63 = scmp.ne.s32.totalorder %s52, %s53
    %p64 = scmp.eq.s32.totalorder %s18, 0
    %p65 = por %p63, %p64
    %p66 = scmp.ne.s32.totalorder %s52, %s53
    %p67 = scmp.eq.s32.totalorder %s19, 1
    %p68 = por %p66, %p67
    %p70 = scmp.ne.s32.totalorder %s53, %s69
    %p71 = scmp.eq.s32.totalorder %s19, 0
    %p72 = por %p70, %p71
    %s74 = sadd.s32 %s73, 1
    %p77 = scmp.eq.s32.totalorder %s13, 1
    %p78 = scmp.ne.s32.totalorder %s73, %s75
    %p79 = scmp.eq.s32.totalorder %s13, 0
    %p80 = por %p78, %p79
    %p81 = scmp.ne.s32.totalorder %s73, %s75
    %p82 = scmp.eq.s32.totalorder %s18, 1
    %p83 = por %p81, %p82
    %p84 = scmp.ne.s32.totalorder %s75, %s76
    %p85 = scmp.eq.s32.totalorder %s18, 0
    %p86 = por %p84, %p85
    %p87 = scmp.ne.s32.totalorder %s75, %s76
    %p88 = scmp.eq.s32.totalorder %s19, 1
    %p89 = por %p87, %p88
    %p91 = scmp.ne.s32.totalorder %s76, %s90
    %p92 = scmp.eq.s32.totalorder %s19, 0
    %p93 = por %p91, %p92
    %s95 = sadd.s32 %s94, 1
    %p98 = scmp.eq.s32.totalorder %s13, 1
    %p99 = scmp.ne.s32.totalorder %s94, %s96
    %p100 = scmp.eq.s32.totalorder %s13, 0
    %p101 = por %p99, %p100
    %p102 = scmp.ne.s32.totalorder %s94, %s96
    %p103 = scmp.eq.s32.totalorder %s18, 1
    %p104 = por %p102, %p103
    %p105 = scmp.ne.s32.totalorder %s96, %s97
    %p106 = scmp.eq.s32.totalorder %s18, 0
    %p107 = por %p105, %p106
    %p108 = scmp.ne.s32.totalorder %s96, %s97
    %p109 = scmp.eq.s32.totalorder %s19, 1
    %p110 = por %p108, %p109
    %p112 = scmp.ne.s32.totalorder %s97, %s111
    %p113 = scmp.eq.s32.totalorder %s19, 0
    %p114 = por %p112, %p113
    %s116 = sadd.s32 %s115, 1
    %p119 = scmp.eq.s32.totalorder %s13, 1
    %p120 = scmp.ne.s32.totalorder %s115, %s117
    %p121 = scmp.eq.s32.totalorder %s13, 0
    %p122 = por %p120, %p121
    %p123 = scmp.ne.s32.totalorder %s115, %s117
    %p124 = scmp.eq.s32.totalorder %s18, 1
    %p125 = por %p123, %p124
    %p126 = scmp.ne.s32.totalorder %s117, %s118
    %p127 = scmp.eq.s32.totalorder %s18, 0
    %p128 = por %p126, %p127
    %p129 = scmp.ne.s32.totalorder %s117, %s118
    %p130 = scmp.eq.s32.totalorder %s19, 1
    %p131 = por %p129, %p130
    %p133 = scmp.ne.s32.totalorder %s118, %s132
    %p134 = scmp.eq.s32.totalorder %s19, 0
    %p135 = por %p133, %p134
    %s137 = sadd.s32 %s136, 1
    %p140 = scmp.eq.s32.totalorder %s13, 1
    %p141 = scmp.ne.s32.totalorder %s136, %s138
    %p142 = scmp.eq.s32.totalorder %s13, 0
    %p143 = por %p141, %p142
    %p144 = scmp.ne.s32.totalorder %s136, %s138
    %p145 = scmp.eq.s32.totalorder %s18, 1
    %p146 = por %p144, %p145
    %p147 = scmp.ne.s32.totalorder %s138, %s139
    %p148 = scmp.eq.s32.totalorder %s18, 0
    %p149 = por %p147, %p148
    %p150 = scmp.ne.s32.totalorder %s138, %s139
    %p151 = scmp.eq.s32.totalorder %s19, 1
    %p152 = por %p150, %p151
    %p154 = scmp.ne.s32.totalorder %s139, %s153
    %p155 = scmp.eq.s32.totalorder %s19, 0
    %p156 = por %p154, %p155
    %s157 = ssub.s32 %s13, %s20
    %p158 = scmp.eq.s32.totalorder %s157, 0
    %s160 = sadd.s32 %s159, 1
    %s161 = scalar_select %p158, %s159, %s160
    %p164 = pneg %p158
    %p165 = scmp.eq.s32.totalorder %s13, 1
    %p166 = por %p164, %p165
    %p167 = scmp.ne.s32.totalorder %s159, %s162
    %p168 = scmp.eq.s32.totalorder %s13, 0
    %p169 = por %p167, %p168
    %p170 = scmp.ne.s32.totalorder %s159, %s162
    %p171 = scmp.eq.s32.totalorder %s18, 1
    %p172 = por %p170, %p171
    %p173 = scmp.ne.s32.totalorder %s162, %s163
    %p174 = scmp.eq.s32.totalorder %s18, 0
    %p175 = por %p173, %p174
    %p176 = scmp.ne.s32.totalorder %s162, %s163
    %p177 = scmp.eq.s32.totalorder %s19, 1
    %p178 = por %p176, %p177
    %p180 = scmp.ne.s32.totalorder %s163, %s179
    %p181 = scmp.eq.s32.totalorder %s19, 0
    %p182 = por %p180, %p181
    %p183 = scmp.le.s32.totalorder 1, %s13
    %p184 = scmp.lt.s32.totalorder %s13, 3
    %p185 = pnand %p183, %p184
    %p186 = pneg %p185
    // Predicated region
    $region9: #{siamese_forward.1} parent=5 // pred_check
      _
    $region10: #{siamese_forward.1} parent=5 // pred_check_branch
      %188 = sbr.rel (%p185) target = $region12
    $region11: #{siamese_forward.1} parent=5 // pred_region
      %s189 = ssub.s32 %s13, 1
      // Predicated region
      $region13: #{siamese_forward.1} parent=11 // pred_check
        %p190 = pneg %p86
      $region14: #{siamese_forward.1} parent=11 // pred_check_branch
        %192 = sbr.rel (%p190) target = $region16
      $region15: #{siamese_forward.1} parent=11 // pred_region
        _
      $region16: #{siamese_forward.1} parent=11 // pred_fallthru
        _
      // Predicated region
      $region17: #{siamese_forward.1} parent=11 // pred_check
        %p193 = pneg %p107
      $region18: #{siamese_forward.1} parent=11 // pred_check_branch
        %195 = sbr.rel (%p193) target = $region20
      $region19: #{siamese_forward.1} parent=11 // pred_region
        _
      $region20: #{siamese_forward.1} parent=11 // pred_fallthru
        _
      // Predicated region
      $region21: #{siamese_forward.1} parent=11 // pred_check
        %p196 = pneg %p128
      $region22: #{siamese_forward.1} parent=11 // pred_check_branch
        %198 = sbr.rel (%p196) target = $region24
      $region23: #{siamese_forward.1} parent=11 // pred_region
        _
      $region24: #{siamese_forward.1} parent=11 // pred_fallthru
        _
      // Predicated region
      $region25: #{siamese_forward.1} parent=11 // pred_check
        %p199 = pneg %p149
      $region26: #{siamese_forward.1} parent=11 // pred_check_branch
        %201 = sbr.rel (%p199) target = $region28
      $region27: #{siamese_forward.1} parent=11 // pred_region
        _
      $region28: #{siamese_forward.1} parent=11 // pred_fallthru
        _
    $region12: #{siamese_forward.1} parent=5 // pred_fallthru
      _
    %p202 = scmp.lt.s32.totalorder %s13, 2
    // Predicated region
    $region29: #{siamese_forward.1} parent=5 // pred_check
      %p203 = pneg %p202
    $region30: #{siamese_forward.1} parent=5 // pred_check_branch
      %205 = sbr.rel (%p203) target = $region32
    $region31: #{siamese_forward.1} parent=5 // pred_region
      // Predicated region
      $region33: #{siamese_forward.1} parent=31 // pred_check
        %p206 = pneg %p33
      $region34: #{siamese_forward.1} parent=31 // pred_check_branch
        %208 = sbr.rel (%p206) target = $region36
      $region35: #{siamese_forward.1} parent=31 // pred_region
        %s209 = smul.u32 16, %s13
        %p210 = scmp.lt.s32.totalorder %s209, 31
        %s211 = scalar_select %p210, %s209, 31
        %s212 = smul.addr %s211, 3
        %s213 = smul.addr %s212, 8
        %s214 = scalar_lea.vmem %s0, %s213
        %s215 = smul.u32 16, %s13
      $region36: #{siamese_forward.1} parent=31 // pred_fallthru
        _
      // Predicated region
      $region37: #{siamese_forward.1} parent=31 // pred_check
        %p216 = pneg %p59
      $region38: #{siamese_forward.1} parent=31 // pred_check_branch
        %218 = sbr.rel (%p216) target = $region40
      $region39: #{siamese_forward.1} parent=31 // pred_region
        %s219 = smul.u32 16, %s13
        %p220 = scmp.lt.s32.totalorder %s219, 31
        %s221 = scalar_select %p220, %s219, 31
        %s222 = smul.addr %s221, 3
        %s223 = smul.addr %s222, 8
        %s224 = scalar_lea.vmem %s1, %s223
        %s225 = smul.u32 16, %s13
      $region40: #{siamese_forward.1} parent=31 // pred_fallthru
        _
    $region32: #{siamese_forward.1} parent=5 // pred_fallthru
      _
    %p226 = scmp.le.s32.totalorder 1, %s13
    %p227 = scmp.lt.s32.totalorder %s13, 3
    %p228 = pnand %p226, %p227
    %p229 = pneg %p228
    // Predicated region
    $region41: #{siamese_forward.1} parent=5 // pred_check
      _
    $region42: #{siamese_forward.1} parent=5 // pred_check_branch
      %231 = sbr.rel (%p228) target = $region44
    $region43: #{siamese_forward.1} parent=5 // pred_region
      %s232 = ssub.s32 %s13, 1
      %s233 = smul.u32 16, %s18
      %p234 = scmp.lt.s32.totalorder %s233, 31
      %s235 = scalar_select %p234, %s233, 31
      %s236 = smul.addr %s235, 3
      %s237 = smul.addr %s236, 8
      %s238 = scalar_lea.vmem %s0, %s237
      %p239 = pneg %p39
      %p240 = pneg %p36
      %s241 = smul.u32 16, %s18
      %p242 = scmp.lt.s32.totalorder %s241, 31
      %s243 = scalar_select %p242, %s241, 31
      %s244 = smul.addr %s243, 3
      %s245 = smul.addr %s244, 8
      %s246 = scalar_lea.vmem %s1, %s245
      %p247 = pneg %p65
      %p248 = pneg %p62
      %p249 = pneg %p86
      %p250 = pneg %p83
      %p251 = pneg %p107
      %p252 = pneg %p104
      %p253 = pneg %p128
      %p254 = pneg %p125
      %p255 = pneg %p149
      %p256 = pneg %p146
      %p257 = pneg %p175
      %p258 = pneg %p172
      %p259 = scmp.lt.s32.totalorder %s18, 1
      %s260 = scalar_select %p259, %s18, 1
      %s261 = scalar_lea.vmem %s6, %s260
      %s262 = smul.u32 16, %s18
      %p263 = scmp.lt.s32.totalorder %s262, 31
      %s264 = scalar_select %p263, %s262, 31
      %s265 = smul.addr %s264, 3
      %s266 = smul.addr %s265, 8
      %s267 = scalar_lea.vmem %s0, %s266
      %s268 = smul.u32 16, %s18
      %s269 = smul.u32 16, %s18
      %p270 = scmp.lt.s32.totalorder %s269, 31
      %s271 = scalar_select %p270, %s269, 31
      %s272 = smul.addr %s271, 3
      %s273 = smul.addr %s272, 8
      %s274 = scalar_lea.vmem %s1, %s273
      %s275 = smul.u32 16, %s18
      %p276 = scmp.lt.s32.totalorder %s18, 1
      %s277 = scalar_select %p276, %s18, 1
      %s278 = scalar_lea.vmem %s6, %s277
      %v279 = vld [vmem:[%s2] sm:$0xf]
      %v280 = vld [vmem:[%s2 + $0x4] sm:$0xf]
      %v281 = vld [vmem:[%s2 + $0x8] sm:$0xf]
      %v282 = vld [vmem:[%s2 + $0xc] sm:$0xf]
      %v283 = vld [vmem:[%s2 + $0x10] sm:$0xf]
      %v284 = vld [vmem:[%s2 + $0x14] sm:$0xf]
      %v285 = vld [vmem:[%s2 + $0x18] sm:$0xf]
      %v286 = vld [vmem:[%s2 + $0x1c] sm:$0xf]
      %v287 = vld [vmem:[%s2 + $0x20] sm:$0xf]
      %v288 = vld [vmem:[%s2 + $0x24] sm:$0xf]
      %v289 = vld [vmem:[%s2 + $0x28] sm:$0xf]
      %v290 = vld [vmem:[%s2 + $0x2c] sm:$0xf]
      %v291 = vld [vmem:[%s2 + $0x30] sm:$0xf]
      %v292 = vld [vmem:[%s2 + $0x34] sm:$0xf]
      %v293 = vld [vmem:[%s2 + $0x38] sm:$0xf]
      %v294 = vld [vmem:[%s2 + $0x3c] sm:$0xf]
      %v295 = vld [vmem:[%s2 + $0x40] sm:$0xf]
      %v296 = vld [vmem:[%s2 + $0x44] sm:$0xf]
      %v297 = vld [vmem:[%s2 + $0x48] sm:$0xf]
      %v298 = vld [vmem:[%s2 + $0x4c] sm:$0xf]
      %v299 = vld [vmem:[%s2 + $0x50] sm:$0xf]
      %v300 = vld [vmem:[%s2 + $0x54] sm:$0xf]
      %v301 = vld [vmem:[%s2 + $0x58] sm:$0xf]
      %v302 = vld [vmem:[%s2 + $0x5c] sm:$0xf]
      %v303 = vld [vmem:[%s2 + $0x60] sm:$0xf]
      %v304 = vld [vmem:[%s2 + $0x64] sm:$0xf]
      %v305 = vld [vmem:[%s2 + $0x68] sm:$0xf]
      %v306 = vld [vmem:[%s2 + $0x6c] sm:$0xf]
      %v307 = vld [vmem:[%s2 + $0x70] sm:$0xf]
      %v308 = vld [vmem:[%s2 + $0x74] sm:$0xf]
      %v309 = vld [vmem:[%s2 + $0x78] sm:$0xf]
      %v310 = vld [vmem:[%s2 + $0x7c] sm:$0xf]
      %v311 = vld [vmem:[%s2 + $0x80] sm:$0xf]
      %v312 = vld [vmem:[%s2 + $0x84] sm:$0xf]
      %v313 = vld [vmem:[%s2 + $0x88] sm:$0xf]
      %v314 = vld [vmem:[%s2 + $0x8c] sm:$0xf]
      %v315 = vld [vmem:[%s2 + $0x90] sm:$0xf]
      %v316 = vld [vmem:[%s2 + $0x94] sm:$0xf]
      %v317 = vld [vmem:[%s2 + $0x98] sm:$0xf]
      %v318 = vld [vmem:[%s2 + $0x9c] sm:$0xf]
      %v319 = vld [vmem:[%s2 + $0xa0] sm:$0xf]
      %v320 = vld [vmem:[%s2 + $0xa4] sm:$0xf]
      %v321 = vld [vmem:[%s2 + $0xa8] sm:$0xf]
      %v322 = vld [vmem:[%s2 + $0xac] sm:$0xf]
      %v323 = vld [vmem:[%s2 + $0xb0] sm:$0xf]
      %v324 = vld [vmem:[%s2 + $0xb4] sm:$0xf]
      %v325 = vld [vmem:[%s2 + $0xb8] sm:$0xf]
      %v326 = vld [vmem:[%s2 + $0xbc] sm:$0xf]
      %v327 = vld [vmem:[%s3] sm:$0x1]
      %v328 = vld [vmem:[%s267] sm:$0xff]
      %v329 = vld [vmem:[%s267 + $0x8] sm:$0xff]
      %v330 = vld [vmem:[%s267 + $0x10] sm:$0xff]
      %v331 = vld [vmem:[%s267 + $0x18] sm:$0xff]
      %v332 = vld [vmem:[%s267 + $0x20] sm:$0xff]
      %v333 = vld [vmem:[%s267 + $0x28] sm:$0xff]
      %v334 = vld [vmem:[%s267 + $0x30] sm:$0xff]
      %v335 = vld [vmem:[%s267 + $0x38] sm:$0xff]
      %v336 = vld [vmem:[%s267 + $0x40] sm:$0xff]
      %v337 = vld [vmem:[%s267 + $0x48] sm:$0xff]
      %v338 = vld [vmem:[%s267 + $0x50] sm:$0xff]
      %v339 = vld [vmem:[%s267 + $0x58] sm:$0xff]
      %v340 = vld [vmem:[%s267 + $0x60] sm:$0xff]
      %v341 = vld [vmem:[%s267 + $0x68] sm:$0xff]
      %v342 = vld [vmem:[%s267 + $0x70] sm:$0xff]
      %v343 = vld [vmem:[%s267 + $0x78] sm:$0xff]
      %v344 = vld [vmem:[%s267 + $0x80] sm:$0xff]
      %v345 = vld [vmem:[%s267 + $0x88] sm:$0xff]
      %v346 = vld [vmem:[%s267 + $0x90] sm:$0xff]
      %v347 = vld [vmem:[%s267 + $0x98] sm:$0xff]
      %v348 = vld [vmem:[%s267 + $0xa0] sm:$0xff]
      %v349 = vld [vmem:[%s267 + $0xa8] sm:$0xff]
      %v350 = vld [vmem:[%s267 + $0xb0] sm:$0xff]
      %v351 = vld [vmem:[%s267 + $0xb8] sm:$0xff]
      %v352 = vld [vmem:[%s267 + $0xc0] sm:$0xff]
      %v353 = vld [vmem:[%s267 + $0xc8] sm:$0xff]
      %v354 = vld [vmem:[%s267 + $0xd0] sm:$0xff]
      %v355 = vld [vmem:[%s267 + $0xd8] sm:$0xff]
      %v356 = vld [vmem:[%s267 + $0xe0] sm:$0xff]
      %v357 = vld [vmem:[%s267 + $0xe8] sm:$0xff]
      %v358 = vld [vmem:[%s267 + $0xf0] sm:$0xff]
      %v359 = vld [vmem:[%s267 + $0xf8] sm:$0xff]
      %v360 = vld [vmem:[%s267 + $0x100] sm:$0xff]
      %v361 = vld [vmem:[%s267 + $0x108] sm:$0xff]
      %v362 = vld [vmem:[%s267 + $0x110] sm:$0xff]
      %v363 = vld [vmem:[%s267 + $0x118] sm:$0xff]
      %v364 = vld [vmem:[%s267 + $0x120] sm:$0xff]
      %v365 = vld [vmem:[%s267 + $0x128] sm:$0xff]
      %v366 = vld [vmem:[%s267 + $0x130] sm:$0xff]
      %v367 = vld [vmem:[%s267 + $0x138] sm:$0xff]
      %v368 = vld [vmem:[%s267 + $0x140] sm:$0xff]
      %v369 = vld [vmem:[%s267 + $0x148] sm:$0xff]
      %v370 = vld [vmem:[%s267 + $0x150] sm:$0xff]
      %v371 = vld [vmem:[%s267 + $0x158] sm:$0xff]
      %v372 = vld [vmem:[%s267 + $0x160] sm:$0xff]
      %v373 = vld [vmem:[%s267 + $0x168] sm:$0xff]
      %v374 = vld [vmem:[%s267 + $0x170] sm:$0xff]
      %v375 = vld [vmem:[%s267 + $0x178] sm:$0xff]
      %v376 = vpack.c.bf16 %v331, %v328
      %v377 = vpack.c.bf16 %v332, %v329
      %v378 = vpack.c.bf16 %v333, %v330
      %v379 = vpack.c.bf16 %v337, %v334
      %v380 = vpack.c.bf16 %v338, %v335
      %v381 = vpack.c.bf16 %v339, %v336
      %v382 = vpack.c.bf16 %v343, %v340
      %v383 = vpack.c.bf16 %v344, %v341
      %v384 = vpack.c.bf16 %v345, %v342
      %v385 = vpack.c.bf16 %v349, %v346
      %v386 = vpack.c.bf16 %v350, %v347
      %v387 = vpack.c.bf16 %v351, %v348
      %v388 = vpack.c.bf16 %v355, %v352
      %v389 = vpack.c.bf16 %v356, %v353
      %v390 = vpack.c.bf16 %v357, %v354
      %v391 = vpack.c.bf16 %v361, %v358
      %v392 = vpack.c.bf16 %v362, %v359
      %v393 = vpack.c.bf16 %v363, %v360
      %v394 = vpack.c.bf16 %v367, %v364
      %v395 = vpack.c.bf16 %v368, %v365
      %v396 = vpack.c.bf16 %v369, %v366
      %v397 = vpack.c.bf16 %v373, %v370
      %v398 = vpack.c.bf16 %v374, %v371
      %v399 = vpack.c.bf16 %v375, %v372
      %v400 = vld [vmem:[%s274] sm:$0xff]
      %v401 = vld [vmem:[%s274 + $0x8] sm:$0xff]
      %v402 = vld [vmem:[%s274 + $0x10] sm:$0xff]
      %v403 = vld [vmem:[%s274 + $0x18] sm:$0xff]
      %v404 = vld [vmem:[%s274 + $0x20] sm:$0xff]
      %v405 = vld [vmem:[%s274 + $0x28] sm:$0xff]
      %v406 = vld [vmem:[%s274 + $0x30] sm:$0xff]
      %v407 = vld [vmem:[%s274 + $0x38] sm:$0xff]
      %v408 = vld [vmem:[%s274 + $0x40] sm:$0xff]
      %v409 = vld [vmem:[%s274 + $0x48] sm:$0xff]
      %v410 = vld [vmem:[%s274 + $0x50] sm:$0xff]
      %v411 = vld [vmem:[%s274 + $0x58] sm:$0xff]
      %v412 = vld [vmem:[%s274 + $0x60] sm:$0xff]
      %v413 = vld [vmem:[%s274 + $0x68] sm:$0xff]
      %v414 = vld [vmem:[%s274 + $0x70] sm:$0xff]
      %v415 = vld [vmem:[%s274 + $0x78] sm:$0xff]
      %v416 = vld [vmem:[%s274 + $0x80] sm:$0xff]
      %v417 = vld [vmem:[%s274 + $0x88] sm:$0xff]
      %v418 = vld [vmem:[%s274 + $0x90] sm:$0xff]
      %v419 = vld [vmem:[%s274 + $0x98] sm:$0xff]
      %v420 = vld [vmem:[%s274 + $0xa0] sm:$0xff]
      %v421 = vld [vmem:[%s274 + $0xa8] sm:$0xff]
      %v422 = vld [vmem:[%s274 + $0xb0] sm:$0xff]
      %v423 = vld [vmem:[%s274 + $0xb8] sm:$0xff]
      %v424 = vld [vmem:[%s274 + $0xc0] sm:$0xff]
      %v425 = vld [vmem:[%s274 + $0xc8] sm:$0xff]
      %v426 = vld [vmem:[%s274 + $0xd0] sm:$0xff]
      %v427 = vld [vmem:[%s274 + $0xd8] sm:$0xff]
      %v428 = vld [vmem:[%s274 + $0xe0] sm:$0xff]
      %v429 = vld [vmem:[%s274 + $0xe8] sm:$0xff]
      %v430 = vld [vmem:[%s274 + $0xf0] sm:$0xff]
      %v431 = vld [vmem:[%s274 + $0xf8] sm:$0xff]
      %v432 = vld [vmem:[%s274 + $0x100] sm:$0xff]
      %v433 = vld [vmem:[%s274 + $0x108] sm:$0xff]
      %v434 = vld [vmem:[%s274 + $0x110] sm:$0xff]
      %v435 = vld [vmem:[%s274 + $0x118] sm:$0xff]
      %v436 = vld [vmem:[%s274 + $0x120] sm:$0xff]
      %v437 = vld [vmem:[%s274 + $0x128] sm:$0xff]
      %v438 = vld [vmem:[%s274 + $0x130] sm:$0xff]
      %v439 = vld [vmem:[%s274 + $0x138] sm:$0xff]
      %v440 = vld [vmem:[%s274 + $0x140] sm:$0xff]
      %v441 = vld [vmem:[%s274 + $0x148] sm:$0xff]
      %v442 = vld [vmem:[%s274 + $0x150] sm:$0xff]
      %v443 = vld [vmem:[%s274 + $0x158] sm:$0xff]
      %v444 = vld [vmem:[%s274 + $0x160] sm:$0xff]
      %v445 = vld [vmem:[%s274 + $0x168] sm:$0xff]
      %v446 = vld [vmem:[%s274 + $0x170] sm:$0xff]
      %v447 = vld [vmem:[%s274 + $0x178] sm:$0xff]
      %v448 = vpack.c.bf16 %v403, %v400
      %v449 = vpack.c.bf16 %v404, %v401
      %v450 = vpack.c.bf16 %v405, %v402
      %v451 = vpack.c.bf16 %v409, %v406
      %v452 = vpack.c.bf16 %v410, %v407
      %v453 = vpack.c.bf16 %v411, %v408
      %v454 = vpack.c.bf16 %v415, %v412
      %v455 = vpack.c.bf16 %v416, %v413
      %v456 = vpack.c.bf16 %v417, %v414
      %v457 = vpack.c.bf16 %v421, %v418
      %v458 = vpack.c.bf16 %v422, %v419
      %v459 = vpack.c.bf16 %v423, %v420
      %v460 = vpack.c.bf16 %v427, %v424
      %v461 = vpack.c.bf16 %v428, %v425
      %v462 = vpack.c.bf16 %v429, %v426
      %v463 = vpack.c.bf16 %v433, %v430
      %v464 = vpack.c.bf16 %v434, %v431
      %v465 = vpack.c.bf16 %v435, %v432
      %v466 = vpack.c.bf16 %v439, %v436
      %v467 = vpack.c.bf16 %v440, %v437
      %v468 = vpack.c.bf16 %v441, %v438
      %v469 = vpack.c.bf16 %v445, %v442
      %v470 = vpack.c.bf16 %v446, %v443
      %v471 = vpack.c.bf16 %v447, %v444
      %v473 = vperm.slane %v327, 0
      %v523 = vunpack.c.l.b16 %v279
      %v524 = vunpack.c.l.b16 %v280
      %v525 = vunpack.c.l.b16 %v281
      %v526 = vunpack.c.l.b16 %v282
      %v527 = vunpack.c.l.b16 %v283
      %v528 = vunpack.c.l.b16 %v284
      %v529 = vunpack.c.l.b16 %v285
      %v530 = vunpack.c.l.b16 %v286
      %v531 = vunpack.c.l.b16 %v287
      %v532 = vunpack.c.l.b16 %v288
      %v533 = vunpack.c.l.b16 %v289
      %v534 = vunpack.c.l.b16 %v290
      %v535 = vunpack.c.l.b16 %v291
      %v536 = vunpack.c.l.b16 %v292
      %v537 = vunpack.c.l.b16 %v293
      %v538 = vunpack.c.l.b16 %v294
      %v539 = vunpack.c.l.b16 %v295
      %v540 = vunpack.c.l.b16 %v296
      %v541 = vunpack.c.l.b16 %v297
      %v542 = vunpack.c.l.b16 %v298
      %v543 = vunpack.c.l.b16 %v299
      %v544 = vunpack.c.l.b16 %v300
      %v545 = vunpack.c.l.b16 %v301
      %v546 = vunpack.c.l.b16 %v302
      %v547 = vunpack.c.l.b16 %v303
      %v548 = vunpack.c.l.b16 %v304
      %v549 = vunpack.c.l.b16 %v305
      %v550 = vunpack.c.l.b16 %v306
      %v551 = vunpack.c.l.b16 %v307
      %v552 = vunpack.c.l.b16 %v308
      %v553 = vunpack.c.l.b16 %v309
      %v554 = vunpack.c.l.b16 %v310
      %v555 = vunpack.c.l.b16 %v311
      %v556 = vunpack.c.l.b16 %v312
      %v557 = vunpack.c.l.b16 %v313
      %v558 = vunpack.c.l.b16 %v314
      %v559 = vunpack.c.l.b16 %v315
      %v560 = vunpack.c.l.b16 %v316
      %v561 = vunpack.c.l.b16 %v317
      %v562 = vunpack.c.l.b16 %v318
      %v563 = vunpack.c.l.b16 %v319
      %v564 = vunpack.c.l.b16 %v320
      %v565 = vunpack.c.l.b16 %v321
      %v566 = vunpack.c.l.b16 %v322
      %v567 = vunpack.c.l.b16 %v323
      %v568 = vunpack.c.l.b16 %v324
      %v569 = vunpack.c.l.b16 %v325
      %v570 = vunpack.c.l.b16 %v326
      %v571 = vpack.c.b16 %v524, %v523
      %v572 = vpack.c.b16 %v526, %v525
      %v573 = vpack.c.b16 %v528, %v527
      %v574 = vpack.c.b16 %v530, %v529
      %v575 = vpack.c.b16 %v532, %v531
      %v576 = vpack.c.b16 %v534, %v533
      %v577 = vpack.c.b16 %v536, %v535
      %v578 = vpack.c.b16 %v538, %v537
      %v579 = vpack.c.b16 %v540, %v539
      %v580 = vpack.c.b16 %v542, %v541
      %v581 = vpack.c.b16 %v544, %v543
      %v582 = vpack.c.b16 %v546, %v545
      %v583 = vpack.c.b16 %v548, %v547
      %v584 = vpack.c.b16 %v550, %v549
      %v585 = vpack.c.b16 %v552, %v551
      %v586 = vpack.c.b16 %v554, %v553
      %v587 = vpack.c.b16 %v556, %v555
      %v588 = vpack.c.b16 %v558, %v557
      %v589 = vpack.c.b16 %v560, %v559
      %v590 = vpack.c.b16 %v562, %v561
      %v591 = vpack.c.b16 %v564, %v563
      %v592 = vpack.c.b16 %v566, %v565
      %v593 = vpack.c.b16 %v568, %v567
      %v594 = vpack.c.b16 %v570, %v569
      %619 = vmatpush.bf16.msra.mxu0 %v578
      %620 = vmatpush.bf16.msra.mxu0 %v577
      %621 = vmatpush.bf16.msra.mxu0 %v576
      %622 = vmatpush.bf16.msra.mxu0 %v575
      %623 = vmatpush.bf16.msra.mxu0 %v574
      %624 = vmatpush.bf16.msra.mxu0 %v573
      %625 = vmatpush.bf16.msra.mxu0 %v572
      %626 = vmatpush.bf16.msra.mxu0 %v571
      %627 = vmatmul.bf16.gmra.mxu0 %v376
      %v628 = vpop.f32.mrf.mxu0
      %v629 = vadd.f32 %v473, %v628
      %v630 = vpop.f32.mrf.mxu0
      %v631 = vadd.f32 %v473, %v630
      %632 = vmatmul.bf16.gmra.mxu0 %v379
      %v633 = vpop.f32.mrf.mxu0
      %v634 = vadd.f32 %v473, %v633
      %v635 = vpop.f32.mrf.mxu0
      %v636 = vadd.f32 %v473, %v635
      %637 = vmatmul.bf16.gmra.mxu0 %v382
      %v638 = vpop.f32.mrf.mxu0
      %v639 = vadd.f32 %v473, %v638
      %v640 = vpop.f32.mrf.mxu0
      %v641 = vadd.f32 %v473, %v640
      %642 = vmatmul.bf16.gmra.mxu0 %v385
      %v643 = vpop.f32.mrf.mxu0
      %v644 = vadd.f32 %v473, %v643
      %v645 = vpop.f32.mrf.mxu0
      %v646 = vadd.f32 %v473, %v645
      %647 = vmatmul.bf16.gmra.mxu0 %v388
      %v648 = vpop.f32.mrf.mxu0
      %v649 = vadd.f32 %v473, %v648
      %v650 = vpop.f32.mrf.mxu0
      %v651 = vadd.f32 %v473, %v650
      %652 = vmatmul.bf16.gmra.mxu0 %v391
      %v653 = vpop.f32.mrf.mxu0
      %v654 = vadd.f32 %v473, %v653
      %v655 = vpop.f32.mrf.mxu0
      %v656 = vadd.f32 %v473, %v655
      %657 = vmatmul.bf16.gmra.mxu0 %v394
      %v658 = vpop.f32.mrf.mxu0
      %v659 = vadd.f32 %v473, %v658
      %v660 = vpop.f32.mrf.mxu0
      %v661 = vadd.f32 %v473, %v660
      %662 = vmatmul.bf16.gmra.mxu0 %v397
      %v663 = vpop.f32.mrf.mxu0
      %v664 = vadd.f32 %v473, %v663
      %v665 = vpop.f32.mrf.mxu0
      %v666 = vadd.f32 %v473, %v665
      %667 = vdwg.mxu0
      %668 = vmatpush.bf16.msra.mxu0 %v586
      %669 = vmatpush.bf16.msra.mxu0 %v585
      %670 = vmatpush.bf16.msra.mxu0 %v584
      %671 = vmatpush.bf16.msra.mxu0 %v583
      %672 = vmatpush.bf16.msra.mxu0 %v582
      %673 = vmatpush.bf16.msra.mxu0 %v581
      %674 = vmatpush.bf16.msra.mxu0 %v580
      %675 = vmatpush.bf16.msra.mxu0 %v579
      %676 = vmatmul.bf16.gmra.mxu0 %v377
      %v677 = vpop.f32.mrf.mxu0
      %v678 = vadd.f32 %v629, %v677
      %v679 = vpop.f32.mrf.mxu0
      %v680 = vadd.f32 %v631, %v679
      %681 = vmatmul.bf16.gmra.mxu0 %v380
      %v682 = vpop.f32.mrf.mxu0
      %v683 = vadd.f32 %v634, %v682
      %v684 = vpop.f32.mrf.mxu0
      %v685 = vadd.f32 %v636, %v684
      %686 = vmatmul.bf16.gmra.mxu0 %v383
      %v687 = vpop.f32.mrf.mxu0
      %v688 = vadd.f32 %v639, %v687
      %v689 = vpop.f32.mrf.mxu0
      %v690 = vadd.f32 %v641, %v689
      %691 = vmatmul.bf16.gmra.mxu0 %v386
      %v692 = vpop.f32.mrf.mxu0
      %v693 = vadd.f32 %v644, %v692
      %v694 = vpop.f32.mrf.mxu0
      %v695 = vadd.f32 %v646, %v694
      %696 = vmatmul.bf16.gmra.mxu0 %v389
      %v697 = vpop.f32.mrf.mxu0
      %v698 = vadd.f32 %v649, %v697
      %v699 = vpop.f32.mrf.mxu0
      %v700 = vadd.f32 %v651, %v699
      %701 = vmatmul.bf16.gmra.mxu0 %v392
      %v702 = vpop.f32.mrf.mxu0
      %v703 = vadd.f32 %v654, %v702
      %v704 = vpop.f32.mrf.mxu0
      %v705 = vadd.f32 %v656, %v704
      %706 = vmatmul.bf16.gmra.mxu0 %v395
      %v707 = vpop.f32.mrf.mxu0
      %v708 = vadd.f32 %v659, %v707
      %v709 = vpop.f32.mrf.mxu0
      %v710 = vadd.f32 %v661, %v709
      %711 = vmatmul.bf16.gmra.mxu0 %v398
      %v712 = vpop.f32.mrf.mxu0
      %v713 = vadd.f32 %v664, %v712
      %v714 = vpop.f32.mrf.mxu0
      %v715 = vadd.f32 %v666, %v714
      %716 = vdwg.mxu0
      %717 = vmatpush.bf16.msra.mxu0 %v594
      %718 = vmatpush.bf16.msra.mxu0 %v593
      %719 = vmatpush.bf16.msra.mxu0 %v592
      %720 = vmatpush.bf16.msra.mxu0 %v591
      %721 = vmatpush.bf16.msra.mxu0 %v590
      %722 = vmatpush.bf16.msra.mxu0 %v589
      %723 = vmatpush.bf16.msra.mxu0 %v588
      %724 = vmatpush.bf16.msra.mxu0 %v587
      %725 = vmatmul.bf16.gmra.mxu0 %v378
      %v726 = vpop.f32.mrf.mxu0
      %v727 = vadd.f32 %v678, %v726
      %v728 = vpop.f32.mrf.mxu0
      %v729 = vadd.f32 %v680, %v728
      %730 = vmatmul.bf16.gmra.mxu0 %v381
      %v731 = vpop.f32.mrf.mxu0
      %v732 = vadd.f32 %v683, %v731
      %v733 = vpop.f32.mrf.mxu0
      %v734 = vadd.f32 %v685, %v733
      %735 = vmatmul.bf16.gmra.mxu0 %v384
      %v736 = vpop.f32.mrf.mxu0
      %v737 = vadd.f32 %v688, %v736
      %v738 = vpop.f32.mrf.mxu0
      %v739 = vadd.f32 %v690, %v738
      %740 = vmatmul.bf16.gmra.mxu0 %v387
      %v741 = vpop.f32.mrf.mxu0
      %v742 = vadd.f32 %v693, %v741
      %v743 = vpop.f32.mrf.mxu0
      %v744 = vadd.f32 %v695, %v743
      %745 = vmatmul.bf16.gmra.mxu0 %v390
      %v746 = vpop.f32.mrf.mxu0
      %v747 = vadd.f32 %v698, %v746
      %v748 = vpop.f32.mrf.mxu0
      %v749 = vadd.f32 %v700, %v748
      %750 = vmatmul.bf16.gmra.mxu0 %v393
      %v751 = vpop.f32.mrf.mxu0
      %v752 = vadd.f32 %v703, %v751
      %v753 = vpop.f32.mrf.mxu0
      %v754 = vadd.f32 %v705, %v753
      %755 = vmatmul.bf16.gmra.mxu0 %v396
      %v756 = vpop.f32.mrf.mxu0
      %v757 = vadd.f32 %v708, %v756
      %v758 = vpop.f32.mrf.mxu0
      %v759 = vadd.f32 %v710, %v758
      %760 = vmatmul.bf16.gmra.mxu0 %v399
      %v761 = vpop.f32.mrf.mxu0
      %v762 = vadd.f32 %v713, %v761
      %v763 = vpop.f32.mrf.mxu0
      %v764 = vadd.f32 %v715, %v763
      %765 = vdwg.mxu0
      %v766 = vmax.f32 %v727, 0.0
      %v767 = vmax.f32 %v729, 0.0
      %v768 = vmax.f32 %v732, 0.0
      %v769 = vmax.f32 %v734, 0.0
      %v770 = vmax.f32 %v737, 0.0
      %v771 = vmax.f32 %v739, 0.0
      %v772 = vmax.f32 %v742, 0.0
      %v773 = vmax.f32 %v744, 0.0
      %v774 = vmax.f32 %v747, 0.0
      %v775 = vmax.f32 %v749, 0.0
      %v776 = vmax.f32 %v752, 0.0
      %v777 = vmax.f32 %v754, 0.0
      %v778 = vmax.f32 %v757, 0.0
      %v779 = vmax.f32 %v759, 0.0
      %v780 = vmax.f32 %v762, 0.0
      %v781 = vmax.f32 %v764, 0.0
      %782 = vmatpush.bf16.msra.mxu0 %v578
      %783 = vmatpush.bf16.msra.mxu0 %v577
      %784 = vmatpush.bf16.msra.mxu0 %v576
      %785 = vmatpush.bf16.msra.mxu0 %v575
      %786 = vmatpush.bf16.msra.mxu0 %v574
      %787 = vmatpush.bf16.msra.mxu0 %v573
      %788 = vmatpush.bf16.msra.mxu0 %v572
      %789 = vmatpush.bf16.msra.mxu0 %v571
      %790 = vmatmul.bf16.gmra.mxu0 %v448
      %v791 = vpop.f32.mrf.mxu0
      %v792 = vadd.f32 %v473, %v791
      %v793 = vpop.f32.mrf.mxu0
      %v794 = vadd.f32 %v473, %v793
      %795 = vmatmul.bf16.gmra.mxu0 %v451
      %v796 = vpop.f32.mrf.mxu0
      %v797 = vadd.f32 %v473, %v796
      %v798 = vpop.f32.mrf.mxu0
      %v799 = vadd.f32 %v473, %v798
      %800 = vmatmul.bf16.gmra.mxu0 %v454
      %v801 = vpop.f32.mrf.mxu0
      %v802 = vadd.f32 %v473, %v801
      %v803 = vpop.f32.mrf.mxu0
      %v804 = vadd.f32 %v473, %v803
      %805 = vmatmul.bf16.gmra.mxu0 %v457
      %v806 = vpop.f32.mrf.mxu0
      %v807 = vadd.f32 %v473, %v806
      %v808 = vpop.f32.mrf.mxu0
      %v809 = vadd.f32 %v473, %v808
      %810 = vmatmul.bf16.gmra.mxu0 %v460
      %v811 = vpop.f32.mrf.mxu0
      %v812 = vadd.f32 %v473, %v811
      %v813 = vpop.f32.mrf.mxu0
      %v814 = vadd.f32 %v473, %v813
      %815 = vmatmul.bf16.gmra.mxu0 %v463
      %v816 = vpop.f32.mrf.mxu0
      %v817 = vadd.f32 %v473, %v816
      %v818 = vpop.f32.mrf.mxu0
      %v819 = vadd.f32 %v473, %v818
      %820 = vmatmul.bf16.gmra.mxu0 %v466
      %v821 = vpop.f32.mrf.mxu0
      %v822 = vadd.f32 %v473, %v821
      %v823 = vpop.f32.mrf.mxu0
      %v824 = vadd.f32 %v473, %v823
      %825 = vmatmul.bf16.gmra.mxu0 %v469
      %v826 = vpop.f32.mrf.mxu0
      %v827 = vadd.f32 %v473, %v826
      %v828 = vpop.f32.mrf.mxu0
      %v829 = vadd.f32 %v473, %v828
      %830 = vdwg.mxu0
      %831 = vmatpush.bf16.msra.mxu0 %v586
      %832 = vmatpush.bf16.msra.mxu0 %v585
      %833 = vmatpush.bf16.msra.mxu0 %v584
      %834 = vmatpush.bf16.msra.mxu0 %v583
      %835 = vmatpush.bf16.msra.mxu0 %v582
      %836 = vmatpush.bf16.msra.mxu0 %v581
      %837 = vmatpush.bf16.msra.mxu0 %v580
      %838 = vmatpush.bf16.msra.mxu0 %v579
      %839 = vmatmul.bf16.gmra.mxu0 %v449
      %v840 = vpop.f32.mrf.mxu0
      %v841 = vadd.f32 %v792, %v840
      %v842 = vpop.f32.mrf.mxu0
      %v843 = vadd.f32 %v794, %v842
      %844 = vmatmul.bf16.gmra.mxu0 %v452
      %v845 = vpop.f32.mrf.mxu0
      %v846 = vadd.f32 %v797, %v845
      %v847 = vpop.f32.mrf.mxu0
      %v848 = vadd.f32 %v799, %v847
      %849 = vmatmul.bf16.gmra.mxu0 %v455
      %v850 = vpop.f32.mrf.mxu0
      %v851 = vadd.f32 %v802, %v850
      %v852 = vpop.f32.mrf.mxu0
      %v853 = vadd.f32 %v804, %v852
      %854 = vmatmul.bf16.gmra.mxu0 %v458
      %v855 = vpop.f32.mrf.mxu0
      %v856 = vadd.f32 %v807, %v855
      %v857 = vpop.f32.mrf.mxu0
      %v858 = vadd.f32 %v809, %v857
      %859 = vmatmul.bf16.gmra.mxu0 %v461
      %v860 = vpop.f32.mrf.mxu0
      %v861 = vadd.f32 %v812, %v860
      %v862 = vpop.f32.mrf.mxu0
      %v863 = vadd.f32 %v814, %v862
      %864 = vmatmul.bf16.gmra.mxu0 %v464
      %v865 = vpop.f32.mrf.mxu0
      %v866 = vadd.f32 %v817, %v865
      %v867 = vpop.f32.mrf.mxu0
      %v868 = vadd.f32 %v819, %v867
      %869 = vmatmul.bf16.gmra.mxu0 %v467
      %v870 = vpop.f32.mrf.mxu0
      %v871 = vadd.f32 %v822, %v870
      %v872 = vpop.f32.mrf.mxu0
      %v873 = vadd.f32 %v824, %v872
      %874 = vmatmul.bf16.gmra.mxu0 %v470
      %v875 = vpop.f32.mrf.mxu0
      %v876 = vadd.f32 %v827, %v875
      %v877 = vpop.f32.mrf.mxu0
      %v878 = vadd.f32 %v829, %v877
      %879 = vdwg.mxu0
      %880 = vmatpush.bf16.msra.mxu0 %v594
      %881 = vmatpush.bf16.msra.mxu0 %v593
      %882 = vmatpush.bf16.msra.mxu0 %v592
      %883 = vmatpush.bf16.msra.mxu0 %v591
      %884 = vmatpush.bf16.msra.mxu0 %v590
      %885 = vmatpush.bf16.msra.mxu0 %v589
      %886 = vmatpush.bf16.msra.mxu0 %v588
      %887 = vmatpush.bf16.msra.mxu0 %v587
      %888 = vmatmul.bf16.gmra.mxu0 %v450
      %v889 = vpop.f32.mrf.mxu0
      %v890 = vadd.f32 %v841, %v889
      %v891 = vpop.f32.mrf.mxu0
      %v892 = vadd.f32 %v843, %v891
      %893 = vmatmul.bf16.gmra.mxu0 %v453
      %v894 = vpop.f32.mrf.mxu0
      %v895 = vadd.f32 %v846, %v894
      %v896 = vpop.f32.mrf.mxu0
      %v897 = vadd.f32 %v848, %v896
      %898 = vmatmul.bf16.gmra.mxu0 %v456
      %v899 = vpop.f32.mrf.mxu0
      %v900 = vadd.f32 %v851, %v899
      %v901 = vpop.f32.mrf.mxu0
      %v902 = vadd.f32 %v853, %v901
      %903 = vmatmul.bf16.gmra.mxu0 %v459
      %v904 = vpop.f32.mrf.mxu0
      %v905 = vadd.f32 %v856, %v904
      %v906 = vpop.f32.mrf.mxu0
      %v907 = vadd.f32 %v858, %v906
      %908 = vmatmul.bf16.gmra.mxu0 %v462
      %v909 = vpop.f32.mrf.mxu0
      %v910 = vadd.f32 %v861, %v909
      %v911 = vpop.f32.mrf.mxu0
      %v912 = vadd.f32 %v863, %v911
      %913 = vmatmul.bf16.gmra.mxu0 %v465
      %v914 = vpop.f32.mrf.mxu0
      %v915 = vadd.f32 %v866, %v914
      %v916 = vpop.f32.mrf.mxu0
      %v917 = vadd.f32 %v868, %v916
      %918 = vmatmul.bf16.gmra.mxu0 %v468
      %v919 = vpop.f32.mrf.mxu0
      %v920 = vadd.f32 %v871, %v919
      %v921 = vpop.f32.mrf.mxu0
      %v922 = vadd.f32 %v873, %v921
      %923 = vmatmul.bf16.gmra.mxu0 %v471
      %v924 = vpop.f32.mrf.mxu0
      %v925 = vadd.f32 %v876, %v924
      %v926 = vpop.f32.mrf.mxu0
      %v927 = vadd.f32 %v878, %v926
      %928 = vdwg.mxu0
      %v929 = vmax.f32 %v890, 0.0
      %v930 = vmax.f32 %v892, 0.0
      %v931 = vmax.f32 %v895, 0.0
      %v932 = vmax.f32 %v897, 0.0
      %v933 = vmax.f32 %v900, 0.0
      %v934 = vmax.f32 %v902, 0.0
      %v935 = vmax.f32 %v905, 0.0
      %v936 = vmax.f32 %v907, 0.0
      %v937 = vmax.f32 %v910, 0.0
      %v938 = vmax.f32 %v912, 0.0
      %v939 = vmax.f32 %v915, 0.0
      %v940 = vmax.f32 %v917, 0.0
      %v941 = vmax.f32 %v920, 0.0
      %v942 = vmax.f32 %v922, 0.0
      %v943 = vmax.f32 %v925, 0.0
      %v944 = vmax.f32 %v927, 0.0
      %v945 = vsub.f32 %v766, %v929
      %v946 = vsub.f32 %v767, %v930
      %v947 = vsub.f32 %v768, %v931
      %v948 = vsub.f32 %v769, %v932
      %v949 = vsub.f32 %v770, %v933
      %v950 = vsub.f32 %v771, %v934
      %v951 = vsub.f32 %v772, %v935
      %v952 = vsub.f32 %v773, %v936
      %v953 = vsub.f32 %v774, %v937
      %v954 = vsub.f32 %v775, %v938
      %v955 = vsub.f32 %v776, %v939
      %v956 = vsub.f32 %v777, %v940
      %v957 = vsub.f32 %v778, %v941
      %v958 = vsub.f32 %v779, %v942
      %v959 = vsub.f32 %v780, %v943
      %v960 = vsub.f32 %v781, %v944
      %v961 = vand.u32 2147483647, %v945
      %v962 = vand.u32 2147483647, %v946
      %v963 = vand.u32 2147483647, %v947
      %v964 = vand.u32 2147483647, %v948
      %v965 = vand.u32 2147483647, %v949
      %v966 = vand.u32 2147483647, %v950
      %v967 = vand.u32 2147483647, %v951
      %v968 = vand.u32 2147483647, %v952
      %v969 = vand.u32 2147483647, %v953
      %v970 = vand.u32 2147483647, %v954
      %v971 = vand.u32 2147483647, %v955
      %v972 = vand.u32 2147483647, %v956
      %v973 = vand.u32 2147483647, %v957
      %v974 = vand.u32 2147483647, %v958
      %v975 = vand.u32 2147483647, %v959
      %v976 = vand.u32 2147483647, %v960
      %v977 = vld [vmem:[%s4] sm:$0x1]
      %v979 = vperm.slane %v977, 0
      %v981 = vmul.f32 %v961, %v979
      %v982 = vmul.f32 %v962, %v979
      %v983 = vmul.f32 %v963, %v979
      %v984 = vmul.f32 %v964, %v979
      %v985 = vmul.f32 %v965, %v979
      %v986 = vmul.f32 %v966, %v979
      %v987 = vmul.f32 %v967, %v979
      %v988 = vmul.f32 %v968, %v979
      %v989 = vmul.f32 %v969, %v979
      %v990 = vmul.f32 %v970, %v979
      %v991 = vmul.f32 %v971, %v979
      %v992 = vmul.f32 %v972, %v979
      %v993 = vmul.f32 %v973, %v979
      %v994 = vmul.f32 %v974, %v979
      %v995 = vmul.f32 %v975, %v979
      %v996 = vmul.f32 %v976, %v979
      %997 = vxpose.xlu0.b32.start [1/16] %v981, 128
      %998 = vxpose.xlu0.b32.cont [2/16] %v982, 128
      %999 = vxpose.xlu0.b32.cont [3/16] %v983, 128
      %1000 = vxpose.xlu0.b32.cont [4/16] %v984, 128
      %1001 = vxpose.xlu0.b32.cont [5/16] %v985, 128
      %1002 = vxpose.xlu0.b32.cont [6/16] %v986, 128
      %1003 = vxpose.xlu0.b32.cont [7/16] %v987, 128
      %1004 = vxpose.xlu0.b32.cont [8/16] %v988, 128
      %1005 = vxpose.xlu0.b32.cont [9/16] %v989, 128
      %1006 = vxpose.xlu0.b32.cont [10/16] %v990, 128
      %1007 = vxpose.xlu0.b32.cont [11/16] %v991, 128
      %1008 = vxpose.xlu0.b32.cont [12/16] %v992, 128
      %1009 = vxpose.xlu0.b32.cont [13/16] %v993, 128
      %1010 = vxpose.xlu0.b32.cont [14/16] %v994, 128
      %1011 = vxpose.xlu0.b32.cont [15/16] %v995, 128
      %1012 = vxpose.xlu0.b32.end [16/16] %v996, 128
      %v1013 = vpop.trf.xlu0
      %v1014 = vpop.trf.xlu0
      %v1015 = vpop.trf.xlu0
      %v1016 = vpop.trf.xlu0
      %v1017 = vpop.trf.xlu0
      %v1018 = vpop.trf.xlu0
      %v1019 = vpop.trf.xlu0
      %v1020 = vpop.trf.xlu0
      %v1021 = vpop.trf.xlu0
      %v1022 = vpop.trf.xlu0
      %v1023 = vpop.trf.xlu0
      %v1024 = vpop.trf.xlu0
      %v1025 = vpop.trf.xlu0
      %v1026 = vpop.trf.xlu0
      %v1027 = vpop.trf.xlu0
      %v1028 = vpop.trf.xlu0
      %v1029 = vadd.f32 %v1013, %v1014
      %v1030 = vadd.f32 %v1029, %v1015
      %v1031 = vadd.f32 %v1030, %v1016
      %v1032 = vadd.f32 %v1031, %v1017
      %v1033 = vadd.f32 %v1032, %v1018
      %v1034 = vadd.f32 %v1033, %v1019
      %v1035 = vadd.f32 %v1034, %v1020
      %v1036 = vadd.f32 %v1035, %v1021
      %v1037 = vadd.f32 %v1036, %v1022
      %v1038 = vadd.f32 %v1037, %v1023
      %v1039 = vadd.f32 %v1038, %v1024
      %v1040 = vadd.f32 %v1039, %v1025
      %v1041 = vadd.f32 %v1040, %v1026
      %v1042 = vadd.f32 %v1041, %v1027
      %v1043 = vadd.f32 %v1042, %v1028
      %v1044 = vrot.slane %v1043, 4
      %v1045 = vadd.f32 %v1043, %v1044
      %v1046 = vrot.slane %v1045, 2
      %v1047 = vadd.f32 %v1045, %v1046
      %v1048 = vrot.slane %v1047, 1
      %v1049 = vadd.f32 %v1047, %v1048
      %s1050 = sld [smem:[#allocation2]]
      %v1051 = vstv %s1050
      %v1052 = vadd.f32 %v1049, %v1051
      %v1053 = vxor.u32 %v1052, 2147483648
      %v1054 = vmul.f32 %v1053, 1.442695
      %v1055 = vpow.pop %v1054
      %v1056 = vadd.f32 %v1055, 1.0
      %v1057 = vrcp.pop %v1056
      %v1058 = vmul.f32 %v1056, %v1057
      %v1059 = vsub.f32 1.0, %v1058
      %v1060 = vmul.f32 %v1057, %v1059
      %v1061 = vadd.f32 %v1057, %v1060
      %vm1062 = vweird.f32 %v1056
      %vm1063 = vweird.f32 %v1057
      %vm1064 = vmor %vm1062, %vm1063
      %v1065 = vsel %vm1064, %v1057, %v1061
      %v1066 = vand.u32 2147483647, %v1056
      %vm1067 = vcmp.eq.f32.partialorder %v1066, 8.507059e+37
      %v1068 = vand.u32 %v1056, 2147483648
      %v1069 = vor.u32 1.1754944e-38, %v1068
      %v1070 = vsel %vm1067, %v1069, %v1065
      %v1071 = vmul.f32 1.0, %v1070
      %1072 = vst [vmem:[%s278] sm:$0x1] %v1071
      %p1073 = scmp.lt.s32.totalorder %s18, 1
      %s1074 = scalar_select %p1073, %s18, 1
      %s1075 = scalar_lea.vmem %s6, %s1074
      // Predicated region
      $region45: #{siamese_forward.1} parent=43 // pred_check
        %p1076 = pneg %p172
      $region46: #{siamese_forward.1} parent=43 // pred_check_branch
        %1078 = sbr.rel (%p1076) target = $region48
      $region47: #{siamese_forward.1} parent=43 // pred_region
        _
      $region48: #{siamese_forward.1} parent=43 // pred_fallthru
        _
    $region44: #{siamese_forward.1} parent=5 // pred_fallthru
      _
    %p1079 = scmp.le.s32.totalorder 2, %s13
    // Predicated region
    $region49: #{siamese_forward.1} parent=5 // pred_check
      %p1080 = pneg %p1079
    $region50: #{siamese_forward.1} parent=5 // pred_check_branch
      %1082 = sbr.rel (%p1080) target = $region52
    $region51: #{siamese_forward.1} parent=5 // pred_region
      %s1083 = ssub.s32 %s13, 2
      // Predicated region
      $region53: #{siamese_forward.1} parent=51 // pred_check
        %p1084 = pneg %p178
      $region54: #{siamese_forward.1} parent=51 // pred_check_branch
        %1086 = sbr.rel (%p1084) target = $region56
      $region55: #{siamese_forward.1} parent=51 // pred_region
        %p1087 = scmp.lt.s32.totalorder %s19, 1
        %s1088 = scalar_select %p1087, %s19, 1
        %s1089 = scalar_lea.vmem %s6, %s1088
      $region56: #{siamese_forward.1} parent=51 // pred_fallthru
        _
    $region52: #{siamese_forward.1} parent=5 // pred_fallthru
      _
  $region6: #{siamese_forward.1} parent=0 // loop_footer
    %s17 = sadd.s32 1, %s13
  $region7: #{siamese_forward.1} parent=0 // loop_footer_branch
    %12 = sbr.rel target = $region3
  $region8: #{siamese_forward.1} parent=0 // loop_exit
    _

</llo_original>
